<compile_context>
chip_gen: v7x
topology: tpu7x:2x2x1
jax: 0.10.0
libtpu: 0.0.40
codegen_flags: <defaults>
</compile_context>

<pallas_src>
import jax
import jax.numpy as jnp
from jax import lax
from jax.experimental import pallas as pl
from jax.experimental.pallas import tpu as pltpu

LN_EPS = 1e-5                          # torch.nn.LayerNorm default
_INV_SQRT2 = 0.7071067811865476
_VMEM_LIMIT_BYTES = 48 * 1024 * 1024   # safe on v5e/v6e (128 MiB) and v7x (64 MiB)


def _projection_head_kernel(x_ref, w1_ref, b1_ref, w2_ref, b2_ref,
                            gamma_ref, beta_ref, o_ref):
    # ---- Linear(embedding_dim -> projection_dim): bf16 MXU, f32 accumulate ----
    x = x_ref[...].astype(jnp.bfloat16)
    projected = jnp.dot(x, w1_ref[...], preferred_element_type=jnp.float32)
    projected = projected + b1_ref[...]

    # ---- exact (erf-based) GELU, matching torch.nn.GELU() default (f32 math) ----
    g = 0.5 * projected * (1.0 + lax.erf(projected * _INV_SQRT2))

    # ---- Linear(projection_dim -> projection_dim): bf16 MXU, f32 accumulate ----
    h = jnp.dot(g.astype(jnp.bfloat16), w2_ref[...],
                preferred_element_type=jnp.float32)
    h = h + b2_ref[...]

    # TODO(synk): dropout is identity here (inference / eval semantics).
    y = h + projected                                    # residual

    # ---- LayerNorm over last dim: single-pass statistics ----
    inv_p = jnp.float32(1.0 / y.shape[-1])
    mean = jnp.sum(y, axis=-1, keepdims=True) * inv_p
    mean_sq = jnp.sum(y * y, axis=-1, keepdims=True) * inv_p
    var = jnp.maximum(mean_sq - mean * mean, 0.0)
    normed = (y - mean) * lax.rsqrt(var + LN_EPS)
    o_ref[...] = (normed * gamma_ref[...] + beta_ref[...]).astype(o_ref.dtype)


def _round_up(v, m):
    return (v + m - 1) // m * m


def projection_head(x, w1, b1, w2, b2, gamma, beta, *, tm=256):
    """x: [B, E]; w1: [E, P]; w2: [P, P]; b1/b2/gamma/beta: [P].
    Weights are expected pre-transposed as [in, out] so the kernel runs x @ W."""
    B, E = x.shape
    P = w1.shape[1]

    # bf16 MXU operands; f32 accumulation happens inside the kernel.
    w1_bf = w1.astype(jnp.bfloat16)
    w2_bf = w2.astype(jnp.bfloat16)
    b1_2d = b1.reshape(1, P).astype(jnp.float32)
    b2_2d = b2.reshape(1, P).astype(jnp.float32)
    gamma_2d = gamma.reshape(1, P).astype(jnp.float32)
    beta_2d = beta.reshape(1, P).astype(jnp.float32)

    # Tile sizing: large batch tiles for MXU occupancy, but keep >= 2 grid
    # steps when the batch allows so both TensorCores on v7x get work.
    B8 = _round_up(B, 8)
    if B8 >= 16:
        tm_cap = max(8, (B8 // 2) // 8 * 8)
    else:
        tm_cap = B8
    tm = max(8, min(tm, tm_cap))
    B_pad = _round_up(B8, tm)

    x_in = x if B_pad == B else jnp.pad(x, ((0, B_pad - B), (0, 0)))

    # Constant operands (weights/biases/LN params) use a constant index_map, so
    # Pallas only DMAs them once; x and the output stream by batch tile.
    def const_spec(shape):
        return pl.BlockSpec(shape, lambda i: (0, 0))

    # TODO(synk): for very large embedding dims whose (bf16) weights exceed the
    # v7x 64 MiB VMEM budget, add a K-reduction grid axis over E with an f32
    # accumulator scratch (pl.when init/finalize) instead of resident weights.

    out = pl.pallas_call(
        _projection_head_kernel,
        out_shape=jax.ShapeDtypeStruct((B_pad, P), x.dtype),
        grid_spec=pltpu.PrefetchScalarGridSpec(
            num_scalar_prefetch=0,
            grid=(B_pad // tm,),
            in_specs=[
                pl.BlockSpec((tm, E), lambda i: (i, 0)),   # x tile (streamed)
                const_spec((E, P)),                        # W1 (bf16, resident)
                const_spec((1, P)),                        # b1
                const_spec((P, P)),                        # W2 (bf16, resident)
                const_spec((1, P)),                        # b2
                const_spec((1, P)),                        # gamma
                const_spec((1, P)),                        # beta
            ],
            out_specs=pl.BlockSpec((tm, P), lambda i: (i, 0)),
        ),
        compiler_params=pltpu.CompilerParams(
            dimension_semantics=("parallel",),
            vmem_limit_bytes=_VMEM_LIMIT_BYTES,
        ),
    )(x_in, w1_bf, b1_2d, w2_bf, b2_2d, gamma_2d, beta_2d)
    return out[:B]


if __name__ == "__main__":
    # Small, lane-dense demo shapes: batch=64, embedding_dim=128,
    # projection_dim=128 (grid of 2 batch tiles of 32 rows each).
    B, E, P = 64, 128, 128
    key = jax.random.PRNGKey(0)
    k_x, k_w1, k_b1, k_w2, k_b2 = jax.random.split(key, 5)

    x = jax.random.normal(k_x, (B, E), dtype=jnp.float32)

    # Deterministic init mimicking nn.Linear's uniform(-1/sqrt(fan_in), +...).
    lim1 = float(E) ** -0.5
    w1 = jax.random.uniform(k_w1, (E, P), minval=-lim1, maxval=lim1,
                            dtype=jnp.float32)        # already [in, out]
    b1 = jax.random.uniform(k_b1, (P,), minval=-lim1, maxval=lim1,
                            dtype=jnp.float32)
    lim2 = float(P) ** -0.5
    w2 = jax.random.uniform(k_w2, (P, P), minval=-lim2, maxval=lim2,
                            dtype=jnp.float32)
    b2 = jax.random.uniform(k_b2, (P,), minval=-lim2, maxval=lim2,
                            dtype=jnp.float32)
    gamma = jnp.ones((P,), dtype=jnp.float32)          # LayerNorm default init
    beta = jnp.zeros((P,), dtype=jnp.float32)

    out = projection_head(x, w1, b1, w2, b2, gamma, beta)
    out = jax.block_until_ready(out)

    hp = lax.Precision.HIGHEST

    # (a) Reference mirroring the kernel's MXU math (bf16 operands, f32 accum).
    xb = x.astype(jnp.bfloat16).astype(jnp.float32)
    w1b = w1.astype(jnp.bfloat16).astype(jnp.float32)
    w2b = w2.astype(jnp.bfloat16).astype(jnp.float32)
    proj = jnp.dot(xb, w1b, precision=hp) + b1
    g = 0.5 * proj * (1.0 + lax.erf(proj * _INV_SQRT2))
    gb = g.astype(jnp.bfloat16).astype(jnp.float32)
    y = jnp.dot(gb, w2b, precision=hp) + b2 + proj
    mean = y.mean(-1, keepdims=True)
    var = ((y - mean) ** 2).mean(-1, keepdims=True)
    ref_mxu = (y - mean) / jnp.sqrt(var + LN_EPS) * gamma + beta
    assert jnp.allclose(out, ref_mxu, atol=2e-3, rtol=2e-3)

    # (b) Full-f32 reference with the exact PyTorch-module semantics
    #     (loose tolerance because the kernel uses bf16 matmul operands).
    proj32 = jnp.dot(x, w1, precision=hp) + b1
    g32 = 0.5 * proj32 * (1.0 + lax.erf(proj32 * _INV_SQRT2))
    y32 = jnp.dot(g32, w2, precision=hp) + b2 + proj32
    m32 = y32.mean(-1, keepdims=True)
    v32 = ((y32 - m32) ** 2).mean(-1, keepdims=True)
    ref_f32 = (y32 - m32) / jnp.sqrt(v32 + LN_EPS) * gamma + beta
    assert jnp.allclose(out, ref_f32, atol=5e-2, rtol=5e-2)

    print("KERNEL_OK")
</pallas_src>

<mosaic_0001>
module attributes {stable_mosaic.version = 11 : i64} {
  func.func @_projection_head_kernel(%arg0: i32, %arg1: memref<32x128xf32, #tpu.memory_space<vmem>>, %arg2: memref<128x128xbf16, #tpu.memory_space<vmem>>, %arg3: memref<1x128xf32, #tpu.memory_space<vmem>>, %arg4: memref<128x128xbf16, #tpu.memory_space<vmem>>, %arg5: memref<1x128xf32, #tpu.memory_space<vmem>>, %arg6: memref<1x128xf32, #tpu.memory_space<vmem>>, %arg7: memref<1x128xf32, #tpu.memory_space<vmem>>, %arg8: memref<32x128xf32, #tpu.memory_space<vmem>>) attributes {dimension_semantics = [#tpu.dimension_semantics<parallel>], iteration_bounds = array<i64: 2>, scalar_prefetch = 0 : i64, scratch_operands = 0 : i64, tpu.core_type = #tpu.core_type<tc>, window_params = [{transform_indices = @transform_0, window_bounds = array<i64: 32, 128>}, {pipeline_mode = #tpu.pipeline_mode<synchronous>, transform_indices = @transform_1, window_bounds = array<i64: 128, 128>}, {pipeline_mode = #tpu.pipeline_mode<synchronous>, transform_indices = @transform_2, window_bounds = array<i64: 1, 128>}, {pipeline_mode = #tpu.pipeline_mode<synchronous>, transform_indices = @transform_3, window_bounds = array<i64: 128, 128>}, {pipeline_mode = #tpu.pipeline_mode<synchronous>, transform_indices = @transform_4, window_bounds = array<i64: 1, 128>}, {pipeline_mode = #tpu.pipeline_mode<synchronous>, transform_indices = @transform_5, window_bounds = array<i64: 1, 128>}, {pipeline_mode = #tpu.pipeline_mode<synchronous>, transform_indices = @transform_6, window_bounds = array<i64: 1, 128>}, {transform_indices = @transform_7, window_bounds = array<i64: 32, 128>}]} {
    %c0 = arith.constant 0 : index
    %c0_0 = arith.constant 0 : index
    %0 = vector.load %arg1[%c0, %c0_0] : memref<32x128xf32, #tpu.memory_space<vmem>>, vector<32x128xf32>
    %1 = arith.truncf %0 : vector<32x128xf32> to vector<32x128xbf16>
    %c0_1 = arith.constant 0 : index
    %c0_2 = arith.constant 0 : index
    %2 = vector.load %arg2[%c0_1, %c0_2] : memref<128x128xbf16, #tpu.memory_space<vmem>>, vector<128x128xbf16>
    %cst = arith.constant dense<0.000000e+00> : vector<32x128xf32>
    %3 = tpu.matmul %1, %2, %cst {dimension_numbers = #tpu.dot_dimension_numbers<[1], [0], [0], [1], [0, 0, 1, 1], [], []>} : vector<32x128xbf16>, vector<128x128xbf16>, vector<32x128xf32> -> vector<32x128xf32>
    %c0_3 = arith.constant 0 : index
    %c0_4 = arith.constant 0 : index
    %4 = vector.load %arg3[%c0_3, %c0_4] : memref<1x128xf32, #tpu.memory_space<vmem>>, vector<1x128xf32>
    %5 = vector.broadcast %4 : vector<1x128xf32> to vector<32x128xf32>
    %6 = arith.addf %3, %5 : vector<32x128xf32>
    %cst_5 = arith.constant 5.000000e-01 : f32
    %7 = vector.broadcast %cst_5 : f32 to vector<32x128xf32>
    %8 = arith.mulf %7, %6 : vector<32x128xf32>
    %cst_6 = arith.constant 0.707106769 : f32
    %9 = vector.broadcast %cst_6 : f32 to vector<32x128xf32>
    %10 = arith.mulf %6, %9 : vector<32x128xf32>
    %11 = math.erf %10 : vector<32x128xf32>
    %cst_7 = arith.constant 1.000000e+00 : f32
    %12 = vector.broadcast %cst_7 : f32 to vector<32x128xf32>
    %13 = arith.addf %12, %11 : vector<32x128xf32>
    %14 = arith.mulf %8, %13 : vector<32x128xf32>
    %15 = arith.truncf %14 : vector<32x128xf32> to vector<32x128xbf16>
    %c0_8 = arith.constant 0 : index
    %c0_9 = arith.constant 0 : index
    %16 = vector.load %arg4[%c0_8, %c0_9] : memref<128x128xbf16, #tpu.memory_space<vmem>>, vector<128x128xbf16>
    %cst_10 = arith.constant dense<0.000000e+00> : vector<32x128xf32>
    %17 = tpu.matmul %15, %16, %cst_10 {dimension_numbers = #tpu.dot_dimension_numbers<[1], [0], [0], [1], [0, 0, 1, 1], [], []>} : vector<32x128xbf16>, vector<128x128xbf16>, vector<32x128xf32> -> vector<32x128xf32>
    %c0_11 = arith.constant 0 : index
    %c0_12 = arith.constant 0 : index
    %18 = vector.load %arg5[%c0_11, %c0_12] : memref<1x128xf32, #tpu.memory_space<vmem>>, vector<1x128xf32>
    %19 = vector.broadcast %18 : vector<1x128xf32> to vector<32x128xf32>
    %20 = arith.addf %17, %19 : vector<32x128xf32>
    %21 = arith.addf %20, %6 : vector<32x128xf32>
    %cst_13 = arith.constant dense<0.000000e+00> : vector<32xf32>
    %22 = vector.multi_reduction <add>, %21, %cst_13 [1] : vector<32x128xf32> to vector<32xf32>
    %23 = vector.shape_cast %22 : vector<32xf32> to vector<32x1xf32>
    %cst_14 = arith.constant 7.812500e-03 : f32
    %24 = vector.broadcast %cst_14 : f32 to vector<32x1xf32>
    %25 = arith.mulf %23, %24 : vector<32x1xf32>
    %26 = arith.mulf %21, %21 : vector<32x128xf32>
    %cst_15 = arith.constant dense<0.000000e+00> : vector<32xf32>
    %27 = vector.multi_reduction <add>, %26, %cst_15 [1] : vector<32x128xf32> to vector<32xf32>
    %28 = vector.shape_cast %27 : vector<32xf32> to vector<32x1xf32>
    %cst_16 = arith.constant 7.812500e-03 : f32
    %29 = vector.broadcast %cst_16 : f32 to vector<32x1xf32>
    %30 = arith.mulf %28, %29 : vector<32x1xf32>
    %31 = arith.mulf %25, %25 : vector<32x1xf32>
    %32 = arith.subf %30, %31 : vector<32x1xf32>
    %cst_17 = arith.constant 0.000000e+00 : f32
    %33 = vector.broadcast %cst_17 : f32 to vector<32x1xf32>
    %34 = arith.maximumf %32, %33 : vector<32x1xf32>
    %35 = vector.broadcast %25 : vector<32x1xf32> to vector<32x128xf32>
    %36 = arith.subf %21, %35 : vector<32x128xf32>
    %cst_18 = arith.constant 9.99999974E-6 : f32
    %37 = vector.broadcast %cst_18 : f32 to vector<32x1xf32>
    %38 = arith.addf %34, %37 : vector<32x1xf32>
    %39 = math.rsqrt %38 : vector<32x1xf32>
    %40 = vector.broadcast %39 : vector<32x1xf32> to vector<32x128xf32>
    %41 = arith.mulf %36, %40 : vector<32x128xf32>
    %c0_19 = arith.constant 0 : index
    %c0_20 = arith.constant 0 : index
    %42 = vector.load %arg6[%c0_19, %c0_20] : memref<1x128xf32, #tpu.memory_space<vmem>>, vector<1x128xf32>
    %43 = vector.broadcast %42 : vector<1x128xf32> to vector<32x128xf32>
    %44 = arith.mulf %41, %43 : vector<32x128xf32>
    %c0_21 = arith.constant 0 : index
    %c0_22 = arith.constant 0 : index
    %45 = vector.load %arg7[%c0_21, %c0_22] : memref<1x128xf32, #tpu.memory_space<vmem>>, vector<1x128xf32>
    %46 = vector.broadcast %45 : vector<1x128xf32> to vector<32x128xf32>
    %47 = arith.addf %44, %46 : vector<32x128xf32>
    %c0_23 = arith.constant 0 : index
    %c0_24 = arith.constant 0 : index
    %48 = vector.load %arg8[%c0_23, %c0_24] : memref<32x128xf32, #tpu.memory_space<vmem>>, vector<32x128xf32>
    tpu.vector_store %arg8[%c0_23, %c0_24], %47 {strides = array<i32>} : memref<32x128xf32, #tpu.memory_space<vmem>>, vector<32x128xf32>,
    return
  }
  func.func @transform_0(%arg0: i32) -> (i32, i32) {
    %c0_i32 = arith.constant 0 : i32
    %c0_i32_0 = arith.constant 0 : i32
    return %arg0, %c0_i32 : i32, i32
  }
  func.func @transform_1(%arg0: i32) -> (i32, i32) {
    %c0_i32 = arith.constant 0 : i32
    %c0_i32_0 = arith.constant 0 : i32
    %c0_i32_1 = arith.constant 0 : i32
    return %c0_i32, %c0_i32_0 : i32, i32
  }
  func.func @transform_2(%arg0: i32) -> (i32, i32) {
    %c0_i32 = arith.constant 0 : i32
    %c0_i32_0 = arith.constant 0 : i32
    %c0_i32_1 = arith.constant 0 : i32
    return %c0_i32, %c0_i32_0 : i32, i32
  }
  func.func @transform_3(%arg0: i32) -> (i32, i32) {
    %c0_i32 = arith.constant 0 : i32
    %c0_i32_0 = arith.constant 0 : i32
    %c0_i32_1 = arith.constant 0 : i32
    return %c0_i32, %c0_i32_0 : i32, i32
  }
  func.func @transform_4(%arg0: i32) -> (i32, i32) {
    %c0_i32 = arith.constant 0 : i32
    %c0_i32_0 = arith.constant 0 : i32
    %c0_i32_1 = arith.constant 0 : i32
    return %c0_i32, %c0_i32_0 : i32, i32
  }
  func.func @transform_5(%arg0: i32) -> (i32, i32) {
    %c0_i32 = arith.constant 0 : i32
    %c0_i32_0 = arith.constant 0 : i32
    %c0_i32_1 = arith.constant 0 : i32
    return %c0_i32, %c0_i32_0 : i32, i32
  }
  func.func @transform_6(%arg0: i32) -> (i32, i32) {
    %c0_i32 = arith.constant 0 : i32
    %c0_i32_0 = arith.constant 0 : i32
    %c0_i32_1 = arith.constant 0 : i32
    return %c0_i32, %c0_i32_0 : i32, i32
  }
  func.func @transform_7(%arg0: i32) -> (i32, i32) {
    %c0_i32 = arith.constant 0 : i32
    %c0_i32_0 = arith.constant 0 : i32
    return %arg0, %c0_i32 : i32, i32
  }
}

</mosaic_0001>

<llo_original>
// kernel: tpu_custom_call.1
$region0: #{tpu_custom_call.1}
  #allocation0 [shape = 'u32[]', space=smem, size = 0x4, offset = 0x4, fixed_abs, tag = 'smem constant byte address 0x4 - core index']
  #allocation1 [shape = 'u32[144,128]{1,0:T(1,128)}', space=vmem, size = 0x12000, scoped, tag = 'internal scratch']
  %s0 = inlined_call_operand.hbm [shape: f32[64,128], index: 0, kind: input, shape index: {}]
  %s1 = inlined_call_operand.hbm [shape: bf16[128,128], index: 1, kind: input, shape index: {}]
  %s2 = inlined_call_operand.vmem [shape: f32[1,128], index: 2, kind: input, shape index: {}]
  %s3 = inlined_call_operand.hbm [shape: bf16[128,128], index: 3, kind: input, shape index: {}]
  %s4 = inlined_call_operand.vmem [shape: f32[1,128], index: 4, kind: input, shape index: {}]
  %s5 = inlined_call_operand.vmem [shape: f32[1,128], index: 5, kind: input, shape index: {}]
  %s6 = inlined_call_operand.vmem [shape: f32[1,128], index: 6, kind: input, shape index: {}]
  %s7 = inlined_call_operand.hbm [shape: f32[64,128], index: 7, kind: output, shape index: {}]
  %s8 = sld [smem:[#allocation0]]
  $region73: #{tpu_custom_call.1} parent=0
    _
  %s10 = ssub.s32 1, %s8
  %s11 = scalar_select 0, %s10, %s8
  $region1: #{tpu_custom_call.1} parent=0
    #allocation2 [shape = 'u8[32768]{0}', space=vmem, size = 0x8000, scoped, tag = 'input window, operand 0']
    #allocation3 [shape = 's32[2]{0}', space=sflag, size = 0x8, scoped, tag = 'scoped memory for tpu_custom_call.1']
    #allocation4 [shape = 's32[2]{0}', space=sflag, size = 0x8, scoped, tag = 'scoped memory for tpu_custom_call.1']
    #allocation5 [shape = 'u8[32768]{0}', space=vmem, size = 0x8000, scoped, tag = 'input window, operand 1, single buffered']
    #allocation6 [shape = 's32[1]{0}', space=sflag, size = 0x4, scoped, tag = 'scoped memory for tpu_custom_call.1']
    #allocation7 [shape = 'u8[32768]{0}', space=vmem, size = 0x8000, scoped, tag = 'input window, operand 3, single buffered']
    #allocation8 [shape = 'u8[32768]{0}', space=vmem, size = 0x8000, scoped, tag = 'output window, operand 0']
    %12 = vsyncpa [#allocation3], 0
    %s13 = scalar_lea.sflag [#allocation3], 1
    %14 = vsyncpa %s13, 0
    %15 = vsyncpa [#allocation6], 0
    %16 = vsyncpa [#allocation4], 0
    %s17 = scalar_lea.sflag [#allocation4], 1
    %18 = vsyncpa %s17, 0
    loop: start=0, step=1, limit=4
    $region2: #{tpu_custom_call.1} parent=1 // loop_pre_header
      _
    $region3: #{tpu_custom_call.1} parent=1 // loop_header
      %s20 = sphi 0, %s24
      %p21 = scmp.ge.s32.totalorder %s20, 4
      %s30 = sphi 0, %s32
      %s33 = sphi 0, %s30
      %s34 = sphi 0, %s33
      %s50 = sphi 0, %s34
      %s54 = sphi 0, %s54
      %s56 = sphi 0, %s54
      %s57 = sphi 0, %s56
      %s71 = sphi 0, %s57
      %s75 = sphi 0, %s75
      %s77 = sphi 0, %s75
      %s78 = sphi 0, %s77
      %s92 = sphi 0, %s78
      %s96 = sphi 0, %s96
      %s98 = sphi 0, %s96
      %s99 = sphi 0, %s98
      %s113 = sphi 0, %s99
      %s117 = sphi 0, %s117
      %s119 = sphi 0, %s117
      %s120 = sphi 0, %s119
      %s134 = sphi 0, %s120
      %s138 = sphi 0, %s138
      %s140 = sphi 0, %s138
      %s141 = sphi 0, %s140
      %s155 = sphi 0, %s141
      %s159 = sphi 0, %s159
      %s161 = sphi 0, %s159
      %s162 = sphi 0, %s161
      %s176 = sphi 0, %s162
      %s182 = sphi 0, %s184
      %s185 = sphi 0, %s182
      %s186 = sphi 0, %s185
      %s202 = sphi 0, %s186
    $region4: #{tpu_custom_call.1} parent=1 // loop_header_branch
      %23 = sbr.rel (%p21) target = $region8
    $region5: #{tpu_custom_call.1} parent=1 // loop_body
      %s25 = ssub.s32 %s20, 1
      %s26 = ssub.s32 %s20, 2
      %s27 = sadd.s32 %s20, 1
      %s28 = ssub.s32 %s20, %s27
      %p29 = scmp.eq.s32.totalorder %s28, 0
      %s31 = sadd.s32 %s30, 1
      %s32 = scalar_select %p29, %s30, %s31
      %p35 = pneg %p29
      %p36 = scmp.eq.s32.totalorder %s20, 1
      %p37 = por %p35, %p36
      %p38 = scmp.ne.s32.totalorder %s30, %s33
      %p39 = scmp.eq.s32.totalorder %s20, 0
      %p40 = por %p38, %p39
      %p41 = scmp.ne.s32.totalorder %s30, %s33
      %p42 = scmp.eq.s32.totalorder %s25, 1
      %p43 = por %p41, %p42
      %p44 = scmp.ne.s32.totalorder %s33, %s34
      %p45 = scmp.eq.s32.totalorder %s25, 0
      %p46 = por %p44, %p45
      %p47 = scmp.ne.s32.totalorder %s33, %s34
      %p48 = scmp.eq.s32.totalorder %s26, 1
      %p49 = por %p47, %p48
      %p51 = scmp.ne.s32.totalorder %s34, %s50
      %p52 = scmp.eq.s32.totalorder %s26, 0
      %p53 = por %p51, %p52
      %s55 = sadd.s32 %s54, 1
      %p58 = scmp.eq.s32.totalorder %s20, 1
      %p59 = scmp.ne.s32.totalorder %s54, %s56
      %p60 = scmp.eq.s32.totalorder %s20, 0
      %p61 = por %p59, %p60
      %p62 = scmp.ne.s32.totalorder %s54, %s56
      %p63 = scmp.eq.s32.totalorder %s25, 1
      %p64 = por %p62, %p63
      %p65 = scmp.ne.s32.totalorder %s56, %s57
      %p66 = scmp.eq.s32.totalorder %s25, 0
      %p67 = por %p65, %p66
      %p68 = scmp.ne.s32.totalorder %s56, %s57
      %p69 = scmp.eq.s32.totalorder %s26, 1
      %p70 = por %p68, %p69
      %p72 = scmp.ne.s32.totalorder %s57, %s71
      %p73 = scmp.eq.s32.totalorder %s26, 0
      %p74 = por %p72, %p73
      %s76 = sadd.s32 %s75, 1
      %p79 = scmp.eq.s32.totalorder %s20, 1
      %p80 = scmp.ne.s32.totalorder %s75, %s77
      %p81 = scmp.eq.s32.totalorder %s20, 0
      %p82 = por %p80, %p81
      %p83 = scmp.ne.s32.totalorder %s75, %s77
      %p84 = scmp.eq.s32.totalorder %s25, 1
      %p85 = por %p83, %p84
      %p86 = scmp.ne.s32.totalorder %s77, %s78
      %p87 = scmp.eq.s32.totalorder %s25, 0
      %p88 = por %p86, %p87
      %p89 = scmp.ne.s32.totalorder %s77, %s78
      %p90 = scmp.eq.s32.totalorder %s26, 1
      %p91 = por %p89, %p90
      %p93 = scmp.ne.s32.totalorder %s78, %s92
      %p94 = scmp.eq.s32.totalorder %s26, 0
      %p95 = por %p93, %p94
      %s97 = sadd.s32 %s96, 1
      %p100 = scmp.eq.s32.totalorder %s20, 1
      %p101 = scmp.ne.s32.totalorder %s96, %s98
      %p102 = scmp.eq.s32.totalorder %s20, 0
      %p103 = por %p101, %p102
      %p104 = scmp.ne.s32.totalorder %s96, %s98
      %p105 = scmp.eq.s32.totalorder %s25, 1
      %p106 = por %p104, %p105
      %p107 = scmp.ne.s32.totalorder %s98, %s99
      %p108 = scmp.eq.s32.totalorder %s25, 0
      %p109 = por %p107, %p108
      %p110 = scmp.ne.s32.totalorder %s98, %s99
      %p111 = scmp.eq.s32.totalorder %s26, 1
      %p112 = por %p110, %p111
      %p114 = scmp.ne.s32.totalorder %s99, %s113
      %p115 = scmp.eq.s32.totalorder %s26, 0
      %p116 = por %p114, %p115
      %s118 = sadd.s32 %s117, 1
      %p121 = scmp.eq.s32.totalorder %s20, 1
      %p122 = scmp.ne.s32.totalorder %s117, %s119
      %p123 = scmp.eq.s32.totalorder %s20, 0
      %p124 = por %p122, %p123
      %p125 = scmp.ne.s32.totalorder %s117, %s119
      %p126 = scmp.eq.s32.totalorder %s25, 1
      %p127 = por %p125, %p126
      %p128 = scmp.ne.s32.totalorder %s119, %s120
      %p129 = scmp.eq.s32.totalorder %s25, 0
      %p130 = por %p128, %p129
      %p131 = scmp.ne.s32.totalorder %s119, %s120
      %p132 = scmp.eq.s32.totalorder %s26, 1
      %p133 = por %p131, %p132
      %p135 = scmp.ne.s32.totalorder %s120, %s134
      %p136 = scmp.eq.s32.totalorder %s26, 0
      %p137 = por %p135, %p136
      %s139 = sadd.s32 %s138, 1
      %p142 = scmp.eq.s32.totalorder %s20, 1
      %p143 = scmp.ne.s32.totalorder %s138, %s140
      %p144 = scmp.eq.s32.totalorder %s20, 0
      %p145 = por %p143, %p144
      %p146 = scmp.ne.s32.totalorder %s138, %s140
      %p147 = scmp.eq.s32.totalorder %s25, 1
      %p148 = por %p146, %p147
      %p149 = scmp.ne.s32.totalorder %s140, %s141
      %p150 = scmp.eq.s32.totalorder %s25, 0
      %p151 = por %p149, %p150
      %p152 = scmp.ne.s32.totalorder %s140, %s141
      %p153 = scmp.eq.s32.totalorder %s26, 1
      %p154 = por %p152, %p153
      %p156 = scmp.ne.s32.totalorder %s141, %s155
      %p157 = scmp.eq.s32.totalorder %s26, 0
      %p158 = por %p156, %p157
      %s160 = sadd.s32 %s159, 1
      %p163 = scmp.eq.s32.totalorder %s20, 1
      %p164 = scmp.ne.s32.totalorder %s159, %s161
      %p165 = scmp.eq.s32.totalorder %s20, 0
      %p166 = por %p164, %p165
      %p167 = scmp.ne.s32.totalorder %s159, %s161
      %p168 = scmp.eq.s32.totalorder %s25, 1
      %p169 = por %p167, %p168
      %p170 = scmp.ne.s32.totalorder %s161, %s162
      %p171 = scmp.eq.s32.totalorder %s25, 0
      %p172 = por %p170, %p171
      %p173 = scmp.ne.s32.totalorder %s161, %s162
      %p174 = scmp.eq.s32.totalorder %s26, 1
      %p175 = por %p173, %p174
      %p177 = scmp.ne.s32.totalorder %s162, %s176
      %p178 = scmp.eq.s32.totalorder %s26, 0
      %p179 = por %p177, %p178
      %s180 = ssub.s32 %s20, %s27
      %p181 = scmp.eq.s32.totalorder %s180, 0
      %s183 = sadd.s32 %s182, 1
      %s184 = scalar_select %p181, %s182, %s183
      %p187 = pneg %p181
      %p188 = scmp.eq.s32.totalorder %s20, 1
      %p189 = por %p187, %p188
      %p190 = scmp.ne.s32.totalorder %s182, %s185
      %p191 = scmp.eq.s32.totalorder %s20, 0
      %p192 = por %p190, %p191
      %p193 = scmp.ne.s32.totalorder %s182, %s185
      %p194 = scmp.eq.s32.totalorder %s25, 1
      %p195 = por %p193, %p194
      %p196 = scmp.ne.s32.totalorder %s185, %s186
      %p197 = scmp.eq.s32.totalorder %s25, 0
      %p198 = por %p196, %p197
      %p199 = scmp.ne.s32.totalorder %s185, %s186
      %p200 = scmp.eq.s32.totalorder %s26, 1
      %p201 = por %p199, %p200
      %p203 = scmp.ne.s32.totalorder %s186, %s202
      %p204 = scmp.eq.s32.totalorder %s26, 0
      %p205 = por %p203, %p204
      %p206 = scmp.le.s32.totalorder 1, %s20
      %p207 = scmp.lt.s32.totalorder %s20, 3
      %p208 = pnand %p206, %p207
      %p209 = pneg %p208
      // Predicated region
      $region9: #{tpu_custom_call.1} parent=5 // pred_check
        _
      $region10: #{tpu_custom_call.1} parent=5 // pred_check_branch
        %211 = sbr.rel (%p208) target = $region12
      $region11: #{tpu_custom_call.1} parent=5 // pred_region
        %s212 = ssub.s32 %s20, 1
        // Predicated region
        $region13: #{tpu_custom_call.1} parent=11 // pred_check
          %p213 = pneg %p67
        $region14: #{tpu_custom_call.1} parent=11 // pred_check_branch
          %215 = sbr.rel (%p213) target = $region16
        $region15: #{tpu_custom_call.1} parent=11 // pred_region
          %s217 = ssub.s32 1024, 1024
          %218 = vsyncadd [#allocation6], %s217
          %s219 = sshll.u32 [#allocation5], 4
          %s220 = int_to_ptr.vmem [resolvable:$true] %s219
          %225 = dma.hbm_to_vmem [thread:$0]  %s1, 1024, %s220, [#allocation6], 64, 64, 4
        $region16: #{tpu_custom_call.1} parent=11 // pred_fallthru
          _
        // Predicated region
        $region17: #{tpu_custom_call.1} parent=11 // pred_check
          %p226 = pneg %p88
        $region18: #{tpu_custom_call.1} parent=11 // pred_check_branch
          %228 = sbr.rel (%p226) target = $region20
        $region19: #{tpu_custom_call.1} parent=11 // pred_region
          _
        $region20: #{tpu_custom_call.1} parent=11 // pred_fallthru
          _
        // Predicated region
        $region21: #{tpu_custom_call.1} parent=11 // pred_check
          %p229 = pneg %p109
        $region22: #{tpu_custom_call.1} parent=11 // pred_check_branch
          %231 = sbr.rel (%p229) target = $region24
        $region23: #{tpu_custom_call.1} parent=11 // pred_region
          %s233 = ssub.s32 1024, 1024
          %234 = vsyncadd [#allocation6], %s233
          %s235 = sshll.u32 [#allocation7], 4
          %s236 = int_to_ptr.vmem [resolvable:$true] %s235
          %241 = dma.hbm_to_vmem [thread:$0]  %s3, 1024, %s236, [#allocation6], 64, 64, 4
        $region24: #{tpu_custom_call.1} parent=11 // pred_fallthru
          _
        // Predicated region
        $region25: #{tpu_custom_call.1} parent=11 // pred_check
          %p242 = pneg %p130
        $region26: #{tpu_custom_call.1} parent=11 // pred_check_branch
          %244 = sbr.rel (%p242) target = $region28
        $region27: #{tpu_custom_call.1} parent=11 // pred_region
          _
        $region28: #{tpu_custom_call.1} parent=11 // pred_fallthru
          _
        // Predicated region
        $region29: #{tpu_custom_call.1} parent=11 // pred_check
          %p245 = pneg %p151
        $region30: #{tpu_custom_call.1} parent=11 // pred_check_branch
          %247 = sbr.rel (%p245) target = $region32
        $region31: #{tpu_custom_call.1} parent=11 // pred_region
          _
        $region32: #{tpu_custom_call.1} parent=11 // pred_fallthru
          _
        // Predicated region
        $region33: #{tpu_custom_call.1} parent=11 // pred_check
          %p248 = pneg %p172
        $region34: #{tpu_custom_call.1} parent=11 // pred_check_branch
          %250 = sbr.rel (%p248) target = $region36
        $region35: #{tpu_custom_call.1} parent=11 // pred_region
          _
        $region36: #{tpu_custom_call.1} parent=11 // pred_fallthru
          _
      $region12: #{tpu_custom_call.1} parent=5 // pred_fallthru
        _
      %p251 = scmp.lt.s32.totalorder %s20, 2
      // Predicated region
      $region37: #{tpu_custom_call.1} parent=5 // pred_check
        %p252 = pneg %p251
      $region38: #{tpu_custom_call.1} parent=5 // pred_check_branch
        %254 = sbr.rel (%p252) target = $region40
      $region39: #{tpu_custom_call.1} parent=5 // pred_region
        // Predicated region
        $region41: #{tpu_custom_call.1} parent=39 // pred_check
          %p255 = pneg %p40
        $region42: #{tpu_custom_call.1} parent=39 // pred_check_branch
          %257 = sbr.rel (%p255) target = $region44
        $region43: #{tpu_custom_call.1} parent=39 // pred_region
          %s258 = sand.u32 %s30, 1
          %s259 = scalar_lea.sflag [#allocation3], %s258
          %s260 = sand.u32 %s30, 1
          %s261 = smul.addr %s260, 32
          %s262 = scalar_lea.vmem [#allocation2], %s261
          %s263 = smul.u32 4, %s20
          %s265 = ssub.s32 512, 512
          %266 = vsyncadd %s259, %s265
          %s267 = smul.addr %s263, 128
          %s268 = scalar_lea.hbm %s0, %s267
          %s269 = sshll.u32 %s262, 4
          %s270 = int_to_ptr.vmem [resolvable:$true] %s269
          %275 = dma.hbm_to_vmem [thread:$0]  %s268, 512, %s270, %s259, 128, 128, 8
        $region44: #{tpu_custom_call.1} parent=39 // pred_fallthru
          _
      $region40: #{tpu_custom_call.1} parent=5 // pred_fallthru
        _
      %p276 = scmp.le.s32.totalorder 1, %s20
      %p277 = scmp.lt.s32.totalorder %s20, 3
      %p278 = pnand %p276, %p277
      %p279 = pneg %p278
      // Predicated region
      $region45: #{tpu_custom_call.1} parent=5 // pred_check
        _
      $region46: #{tpu_custom_call.1} parent=5 // pred_check_branch
        %281 = sbr.rel (%p278) target = $region48
      $region47: #{tpu_custom_call.1} parent=5 // pred_region
        %s282 = ssub.s32 %s20, 1
        %s283 = sand.u32 %s33, 1
        %s284 = scalar_lea.sflag [#allocation3], %s283
        %s285 = sand.u32 %s33, 1
        %s286 = smul.addr %s285, 32
        %s287 = scalar_lea.vmem [#allocation2], %s286
        // Predicated region
        $region49: #{tpu_custom_call.1} parent=47 // pred_check
          %p288 = pneg %p46
        $region50: #{tpu_custom_call.1} parent=47 // pred_check_branch
          %290 = sbr.rel (%p288) target = $region52
        $region51: #{tpu_custom_call.1} parent=47 // pred_region
          %291 = dma.done %s284, 512
        $region52: #{tpu_custom_call.1} parent=47 // pred_fallthru
          _
        // Predicated region
        $region53: #{tpu_custom_call.1} parent=47 // pred_check
          %p292 = pneg %p67
        $region54: #{tpu_custom_call.1} parent=47 // pred_check_branch
          %294 = sbr.rel (%p292) target = $region56
        $region55: #{tpu_custom_call.1} parent=47 // pred_region
          %295 = dma.done [#allocation6], 1024
        $region56: #{tpu_custom_call.1} parent=47 // pred_fallthru
          _
        // Predicated region
        $region57: #{tpu_custom_call.1} parent=47 // pred_check
          %p296 = pneg %p109
        $region58: #{tpu_custom_call.1} parent=47 // pred_check_branch
          %298 = sbr.rel (%p296) target = $region60
        $region59: #{tpu_custom_call.1} parent=47 // pred_region
          %299 = dma.done [#allocation6], 1024
        $region60: #{tpu_custom_call.1} parent=47 // pred_fallthru
          _
        %s300 = sand.u32 %s33, 1
        %s301 = scalar_lea.sflag [#allocation3], %s300
        %s302 = sand.u32 %s33, 1
        %s303 = smul.addr %s302, 32
        %s304 = scalar_lea.vmem [#allocation2], %s303
        %p305 = pneg %p46
        %p306 = pneg %p43
        %p307 = pneg %p67
        %p308 = pneg %p64
        %p309 = pneg %p88
        %p310 = pneg %p85
        %p311 = pneg %p109
        %p312 = pneg %p106
        %p313 = pneg %p130
        %p314 = pneg %p127
        %p315 = pneg %p151
        %p316 = pneg %p148
        %p317 = pneg %p172
        %p318 = pneg %p169
        %p319 = pneg %p198
        %p320 = pneg %p195
        %s321 = sand.u32 %s185, 1
        %s322 = scalar_lea.sflag [#allocation4], %s321
        %s323 = sand.u32 %s185, 1
        %s324 = smul.addr %s323, 32
        %s325 = scalar_lea.vmem [#allocation8], %s324
        %s326 = smul.u32 4, %s25
        %s327 = smul.u32 4, %s25
        %v329 = vld [vmem:[%s287] sm:$0xff]
        %v330 = vld [vmem:[%s287 + $0x8] sm:$0xff]
        %v331 = vld [vmem:[%s287 + $0x10] sm:$0xff]
        %v332 = vld [vmem:[%s287 + $0x18] sm:$0xff]
        %v333 = vpack.c.bf16 %v330, %v329
        %v334 = vpack.c.bf16 %v332, %v331
        %v335 = vld [vmem:[#allocation5] sm:$0xf]
        %v336 = vld [vmem:[#allocation5 + $0x4] sm:$0xf]
        %v337 = vld [vmem:[#allocation5 + $0x8] sm:$0xf]
        %v338 = vld [vmem:[#allocation5 + $0xc] sm:$0xf]
        %v339 = vld [vmem:[#allocation5 + $0x10] sm:$0xf]
        %v340 = vld [vmem:[#allocation5 + $0x14] sm:$0xf]
        %v341 = vld [vmem:[#allocation5 + $0x18] sm:$0xf]
        %v342 = vld [vmem:[#allocation5 + $0x1c] sm:$0xf]
        %v343 = vld [vmem:[#allocation5 + $0x20] sm:$0xf]
        %v344 = vld [vmem:[#allocation5 + $0x24] sm:$0xf]
        %v345 = vld [vmem:[#allocation5 + $0x28] sm:$0xf]
        %v346 = vld [vmem:[#allocation5 + $0x2c] sm:$0xf]
        %v347 = vld [vmem:[#allocation5 + $0x30] sm:$0xf]
        %v348 = vld [vmem:[#allocation5 + $0x34] sm:$0xf]
        %v349 = vld [vmem:[#allocation5 + $0x38] sm:$0xf]
        %v350 = vld [vmem:[#allocation5 + $0x3c] sm:$0xf]
        %v351 = vld [vmem:[%s2] sm:$0x1]
        %v353 = vlaneseq
        %v354 = vshrl.u32 %v353, 7
        %v355 = vsub.s32 0, %v354
        %v356 = vrot.slane %v351, %v355
        %v374 = vunpack.c.l.b16 %v335
        %v375 = vunpack.c.l.b16 %v336
        %v376 = vunpack.c.l.b16 %v337
        %v377 = vunpack.c.l.b16 %v338
        %v378 = vunpack.c.l.b16 %v339
        %v379 = vunpack.c.l.b16 %v340
        %v380 = vunpack.c.l.b16 %v341
        %v381 = vunpack.c.l.b16 %v342
        %v382 = vunpack.c.l.b16 %v343
        %v383 = vunpack.c.l.b16 %v344
        %v384 = vunpack.c.l.b16 %v345
        %v385 = vunpack.c.l.b16 %v346
        %v386 = vunpack.c.l.b16 %v347
        %v387 = vunpack.c.l.b16 %v348
        %v388 = vunpack.c.l.b16 %v349
        %v389 = vunpack.c.l.b16 %v350
        %v390 = vpack.c.b16 %v375, %v374
        %v391 = vpack.c.b16 %v377, %v376
        %v392 = vpack.c.b16 %v379, %v378
        %v393 = vpack.c.b16 %v381, %v380
        %v394 = vpack.c.b16 %v383, %v382
        %v395 = vpack.c.b16 %v385, %v384
        %v396 = vpack.c.b16 %v387, %v386
        %v397 = vpack.c.b16 %v389, %v388
        %406 = vmatprep.subr.bf16.mxu0 0
        %407 = vmatpush1.bf16.msra.mxu0 %v390
        %408 = vmatprep.subr.bf16.mxu0 0
        %409 = vmatpush1.bf16.msra.mxu0 %v391
        %410 = vmatprep.subr.bf16.mxu0 0
        %411 = vmatpush1.bf16.msra.mxu0 %v392
        %412 = vmatprep.subr.bf16.mxu0 0
        %413 = vmatpush1.bf16.msra.mxu0 %v393
        %414 = vmatprep.subr.bf16.mxu0 0
        %415 = vmatpush1.bf16.msra.mxu0 %v394
        %416 = vmatprep.subr.bf16.mxu0 0
        %417 = vmatpush1.bf16.msra.mxu0 %v395
        %418 = vmatprep.subr.bf16.mxu0 0
        %419 = vmatpush1.bf16.msra.mxu0 %v396
        %420 = vmatprep.subr.bf16.mxu0 0
        %421 = vmatpush1.bf16.msra.mxu0 %v397
        %422 = vmatprep.subr.bf16.mxu0 0
        %423 = vmatpush1.bf16.msra.mxu0 0
        %424 = vmatprep.subr.bf16.mxu0 0
        %425 = vmatpush1.bf16.msra.mxu0 0
        %426 = vmatprep.subr.bf16.mxu0 0
        %427 = vmatpush1.bf16.msra.mxu0 0
        %428 = vmatprep.subr.bf16.mxu0 0
        %429 = vmatpush1.bf16.msra.mxu0 0
        %430 = vmatprep.subr.bf16.mxu0 0
        %431 = vmatpush1.bf16.msra.mxu0 0
        %432 = vmatprep.subr.bf16.mxu0 0
        %433 = vmatpush1.bf16.msra.mxu0 0
        %434 = vmatprep.subr.bf16.mxu0 0
        %435 = vmatpush1.bf16.msra.mxu0 0
        %436 = vmatprep.subr.bf16.mxu0 0
        %437 = vmatpush1.bf16.msra.mxu0 0
        %438 = vmatprep.mubr.bf16.mxu0 0
        %439 = vmatmul.mubr.bf16.gmra.mrb[0].mxu0 %v333
        %v440 = vpop.f32.mrb[0].mxu0
        %v441 = vadd.f32 %v356, %v440
        %v442 = vpop.f32.mrb[0].mxu0
        %v443 = vpop.f32.mrb[0].mxu0
        %v444 = vadd.f32 %v356, %v443
        %v445 = vpop.f32.mrb[0].mxu0
        %446 = vmatprep.mubr.bf16.mxu0 0
        %447 = vmatmul.mubr.bf16.gmra.mrb[0].mxu0 %v334
        %v448 = vpop.f32.mrb[0].mxu0
        %v449 = vadd.f32 %v356, %v448
        %v450 = vpop.f32.mrb[0].mxu0
        %v451 = vpop.f32.mrb[0].mxu0
        %v452 = vadd.f32 %v356, %v451
        %v453 = vpop.f32.mrb[0].mxu0
        %454 = vdwg.mxu0
        %v455 = vmul.f32 %v441, 0.5
        %v456 = vmul.f32 %v444, 0.5
        %v457 = vmul.f32 %v449, 0.5
        %v458 = vmul.f32 %v452, 0.5
        %v459 = vmul.f32 %v441, 0.70710677
        %v460 = vmul.f32 %v444, 0.70710677
        %v461 = vmul.f32 %v449, 0.70710677
        %v462 = vmul.f32 %v452, 0.70710677
        %v463 = verf.f32.pop %v459
        %v464 = verf.f32.pop %v460
        %v465 = verf.f32.pop %v461
        %v466 = verf.f32.pop %v462
        %v467 = vadd.f32 %v463, 1.0
        %v468 = vadd.f32 %v464, 1.0
        %v469 = vadd.f32 %v465, 1.0
        %v470 = vadd.f32 %v466, 1.0
        %v471 = vmul.f32 %v455, %v467
        %v472 = vmul.f32 %v456, %v468
        %v473 = vmul.f32 %v457, %v469
        %v474 = vmul.f32 %v458, %v470
        %v475 = vpack.c.bf16 %v472, %v471
        %v476 = vpack.c.bf16 %v474, %v473
        %v477 = vld [vmem:[#allocation7] sm:$0xf]
        %v478 = vld [vmem:[#allocation7 + $0x4] sm:$0xf]
        %v479 = vld [vmem:[#allocation7 + $0x8] sm:$0xf]
        %v480 = vld [vmem:[#allocation7 + $0xc] sm:$0xf]
        %v481 = vld [vmem:[#allocation7 + $0x10] sm:$0xf]
        %v482 = vld [vmem:[#allocation7 + $0x14] sm:$0xf]
        %v483 = vld [vmem:[#allocation7 + $0x18] sm:$0xf]
        %v484 = vld [vmem:[#allocation7 + $0x1c] sm:$0xf]
        %v485 = vld [vmem:[#allocation7 + $0x20] sm:$0xf]
        %v486 = vld [vmem:[#allocation7 + $0x24] sm:$0xf]
        %v487 = vld [vmem:[#allocation7 + $0x28] sm:$0xf]
        %v488 = vld [vmem:[#allocation7 + $0x2c] sm:$0xf]
        %v489 = vld [vmem:[#allocation7 + $0x30] sm:$0xf]
        %v490 = vld [vmem:[#allocation7 + $0x34] sm:$0xf]
        %v491 = vld [vmem:[#allocation7 + $0x38] sm:$0xf]
        %v492 = vld [vmem:[#allocation7 + $0x3c] sm:$0xf]
        %v493 = vld [vmem:[%s4] sm:$0x1]
        %v495 = vlaneseq
        %v496 = vshrl.u32 %v495, 7
        %v497 = vsub.s32 0, %v496
        %v498 = vrot.slane %v493, %v497
        %v516 = vunpack.c.l.b16 %v477
        %v517 = vunpack.c.l.b16 %v478
        %v518 = vunpack.c.l.b16 %v479
        %v519 = vunpack.c.l.b16 %v480
        %v520 = vunpack.c.l.b16 %v481
        %v521 = vunpack.c.l.b16 %v482
        %v522 = vunpack.c.l.b16 %v483
        %v523 = vunpack.c.l.b16 %v484
        %v524 = vunpack.c.l.b16 %v485
        %v525 = vunpack.c.l.b16 %v486
        %v526 = vunpack.c.l.b16 %v487
        %v527 = vunpack.c.l.b16 %v488
        %v528 = vunpack.c.l.b16 %v489
        %v529 = vunpack.c.l.b16 %v490
        %v530 = vunpack.c.l.b16 %v491
        %v531 = vunpack.c.l.b16 %v492
        %v532 = vpack.c.b16 %v517, %v516
        %v533 = vpack.c.b16 %v519, %v518
        %v534 = vpack.c.b16 %v521, %v520
        %v535 = vpack.c.b16 %v523, %v522
        %v536 = vpack.c.b16 %v525, %v524
        %v537 = vpack.c.b16 %v527, %v526
        %v538 = vpack.c.b16 %v529, %v528
        %v539 = vpack.c.b16 %v531, %v530
        %548 = vmatprep.subr.bf16.mxu0 0
        %549 = vmatpush1.bf16.msra.mxu0 %v532
        %550 = vmatprep.subr.bf16.mxu0 0
        %551 = vmatpush1.bf16.msra.mxu0 %v533
        %552 = vmatprep.subr.bf16.mxu0 0
        %553 = vmatpush1.bf16.msra.mxu0 %v534
        %554 = vmatprep.subr.bf16.mxu0 0
        %555 = vmatpush1.bf16.msra.mxu0 %v535
        %556 = vmatprep.subr.bf16.mxu0 0
        %557 = vmatpush1.bf16.msra.mxu0 %v536
        %558 = vmatprep.subr.bf16.mxu0 0
        %559 = vmatpush1.bf16.msra.mxu0 %v537
        %560 = vmatprep.subr.bf16.mxu0 0
        %561 = vmatpush1.bf16.msra.mxu0 %v538
        %562 = vmatprep.subr.bf16.mxu0 0
        %563 = vmatpush1.bf16.msra.mxu0 %v539
        %564 = vmatprep.subr.bf16.mxu0 0
        %565 = vmatpush1.bf16.msra.mxu0 0
        %566 = vmatprep.subr.bf16.mxu0 0
        %567 = vmatpush1.bf16.msra.mxu0 0
        %568 = vmatprep.subr.bf16.mxu0 0
        %569 = vmatpush1.bf16.msra.mxu0 0
        %570 = vmatprep.subr.bf16.mxu0 0
        %571 = vmatpush1.bf16.msra.mxu0 0
        %572 = vmatprep.subr.bf16.mxu0 0
        %573 = vmatpush1.bf16.msra.mxu0 0
        %574 = vmatprep.subr.bf16.mxu0 0
        %575 = vmatpush1.bf16.msra.mxu0 0
        %576 = vmatprep.subr.bf16.mxu0 0
        %577 = vmatpush1.bf16.msra.mxu0 0
        %578 = vmatprep.subr.bf16.mxu0 0
        %579 = vmatpush1.bf16.msra.mxu0 0
        %580 = vmatprep.mubr.bf16.mxu0 0
        %581 = vmatmul.mubr.bf16.gmra.mrb[0].mxu0 %v475
        %v582 = vpop.f32.mrb[0].mxu0
        %v583 = vadd.f32 %v498, %v582
        %v584 = vpop.f32.mrb[0].mxu0
        %v585 = vpop.f32.mrb[0].mxu0
        %v586 = vadd.f32 %v498, %v585
        %v587 = vpop.f32.mrb[0].mxu0
        %588 = vmatprep.mubr.bf16.mxu0 0
        %589 = vmatmul.mubr.bf16.gmra.mrb[0].mxu0 %v476
        %v590 = vpop.f32.mrb[0].mxu0
        %v591 = vadd.f32 %v498, %v590
        %v592 = vpop.f32.mrb[0].mxu0
        %v593 = vpop.f32.mrb[0].mxu0
        %v594 = vadd.f32 %v498, %v593
        %v595 = vpop.f32.mrb[0].mxu0
        %596 = vdwg.mxu0
        %v597 = vadd.f32 %v583, %v441
        %v598 = vadd.f32 %v586, %v444
        %v599 = vadd.f32 %v591, %v449
        %v600 = vadd.f32 %v594, %v452
        %601 = vadd.xlane.f32.xlu0 %v597
        %v602 = vpop.xlane.xlu0 %601
        %603 = vadd.xlane.f32.xlu0 %v598
        %v604 = vpop.xlane.xlu0 %603
        %605 = vadd.xlane.f32.xlu0 %v599
        %v606 = vpop.xlane.xlu0 %605
        %607 = vadd.xlane.f32.xlu0 %v600
        %v608 = vpop.xlane.xlu0 %607
        %v609 = vmul.f32 %v602, 0.0078125
        %v610 = vmul.f32 %v604, 0.0078125
        %v611 = vmul.f32 %v606, 0.0078125
        %v612 = vmul.f32 %v608, 0.0078125
        %v613 = vmul.f32 %v597, %v597
        %v614 = vmul.f32 %v598, %v598
        %v615 = vmul.f32 %v599, %v599
        %v616 = vmul.f32 %v600, %v600
        %617 = vadd.xlane.f32.xlu0 %v613
        %v618 = vpop.xlane.xlu0 %617
        %619 = vadd.xlane.f32.xlu0 %v614
        %v620 = vpop.xlane.xlu0 %619
        %621 = vadd.xlane.f32.xlu0 %v615
        %v622 = vpop.xlane.xlu0 %621
        %623 = vadd.xlane.f32.xlu0 %v616
        %v624 = vpop.xlane.xlu0 %623
        %v625 = vmul.f32 %v618, 0.0078125
        %v626 = vmul.f32 %v620, 0.0078125
        %v627 = vmul.f32 %v622, 0.0078125
        %v628 = vmul.f32 %v624, 0.0078125
        %v629 = vmul.f32 %v609, %v609
        %v630 = vmul.f32 %v610, %v610
        %v631 = vmul.f32 %v611, %v611
        %v632 = vmul.f32 %v612, %v612
        %v633 = vsub.f32 %v625, %v629
        %v634 = vsub.f32 %v626, %v630
        %v635 = vsub.f32 %v627, %v631
        %v636 = vsub.f32 %v628, %v632
        %v637 = vmax.f32 %v633, 0.0
        %v638 = vmax.f32 %v634, 0.0
        %v639 = vmax.f32 %v635, 0.0
        %v640 = vmax.f32 %v636, 0.0
        %v641 = vsub.f32 %v597, %v609
        %v642 = vsub.f32 %v598, %v610
        %v643 = vsub.f32 %v599, %v611
        %v644 = vsub.f32 %v600, %v612
        %v645 = vadd.f32 %v637, 1e-05
        %v646 = vadd.f32 %v638, 1e-05
        %v647 = vadd.f32 %v639, 1e-05
        %v648 = vadd.f32 %v640, 1e-05
        %v649 = vrsqrt.pop %v645
        %v650 = vrsqrt.pop %v646
        %v651 = vrsqrt.pop %v647
        %v652 = vrsqrt.pop %v648
        %v653 = vmul.f32 %v641, %v649
        %v654 = vmul.f32 %v642, %v650
        %v655 = vmul.f32 %v643, %v651
        %v656 = vmul.f32 %v644, %v652
        %v657 = vld [vmem:[%s5] sm:$0x1]
        %v659 = vlaneseq
        %v660 = vshrl.u32 %v659, 7
        %v661 = vsub.s32 0, %v660
        %v662 = vrot.slane %v657, %v661
        %v664 = vmul.f32 %v653, %v662
        %v665 = vmul.f32 %v654, %v662
        %v666 = vmul.f32 %v655, %v662
        %v667 = vmul.f32 %v656, %v662
        %v668 = vld [vmem:[%s6] sm:$0x1]
        %v670 = vlaneseq
        %v671 = vshrl.u32 %v670, 7
        %v672 = vsub.s32 0, %v671
        %v673 = vrot.slane %v668, %v672
        %v675 = vadd.f32 %v664, %v673
        %v676 = vadd.f32 %v665, %v673
        %v677 = vadd.f32 %v666, %v673
        %v678 = vadd.f32 %v667, %v673
        %679 = vst [vmem:[%s325] sm:$0xff] %v675
        %680 = vst [vmem:[%s325 + $0x8] sm:$0xff] %v676
        %681 = vst [vmem:[%s325 + $0x10] sm:$0xff] %v677
        %682 = vst [vmem:[%s325 + $0x18] sm:$0xff] %v678
        %s683 = sand.u32 %s185, 1
        %s684 = scalar_lea.sflag [#allocation4], %s683
        %s685 = sand.u32 %s185, 1
        %s686 = smul.addr %s685, 32
        %s687 = scalar_lea.vmem [#allocation8], %s686
        // Predicated region
        $region61: #{tpu_custom_call.1} parent=47 // pred_check
          %p688 = pneg %p195
        $region62: #{tpu_custom_call.1} parent=47 // pred_check_branch
          %690 = sbr.rel (%p688) target = $region64
        $region63: #{tpu_custom_call.1} parent=47 // pred_region
          %s691 = smul.u32 4, %s25
          %s693 = ssub.s32 512, 512
          %694 = vsyncadd %s684, %s693
          %s695 = smul.addr %s691, 128
          %s696 = scalar_lea.hbm %s7, %s695
          %s697 = sshll.u32 %s687, 4
          %s698 = int_to_ptr.vmem [resolvable:$true] %s697
          %703 = dma.vmem_to_hbm [thread:$0]  %s698, 512, %s696, %s684, 128, 128, 8
        $region64: #{tpu_custom_call.1} parent=47 // pred_fallthru
          _
      $region48: #{tpu_custom_call.1} parent=5 // pred_fallthru
        _
      %p704 = scmp.le.s32.totalorder 2, %s20
      // Predicated region
      $region65: #{tpu_custom_call.1} parent=5 // pred_check
        %p705 = pneg %p704
      $region66: #{tpu_custom_call.1} parent=5 // pred_check_branch
        %707 = sbr.rel (%p705) target = $region68
      $region67: #{tpu_custom_call.1} parent=5 // pred_region
        %s708 = ssub.s32 %s20, 2
        // Predicated region
        $region69: #{tpu_custom_call.1} parent=67 // pred_check
          %p709 = pneg %p201
        $region70: #{tpu_custom_call.1} parent=67 // pred_check_branch
          %711 = sbr.rel (%p709) target = $region72
        $region71: #{tpu_custom_call.1} parent=67 // pred_region
          %s712 = sand.u32 %s186, 1
          %s713 = scalar_lea.sflag [#allocation4], %s712
          %s714 = sand.u32 %s186, 1
          %s715 = smul.addr %s714, 32
          %s716 = scalar_lea.vmem [#allocation8], %s715
          %717 = dma.done %s713, 512
        $region72: #{tpu_custom_call.1} parent=67 // pred_fallthru
          _
      $region68: #{tpu_custom_call.1} parent=5 // pred_fallthru
        _
    $region6: #{tpu_custom_call.1} parent=1 // loop_footer
      %s24 = sadd.s32 1, %s20
    $region7: #{tpu_custom_call.1} parent=1 // loop_footer_branch
      %19 = sbr.rel target = $region3
    $region8: #{tpu_custom_call.1} parent=1 // loop_exit
      _
    %718 = vsyncpa [#allocation3], 1
    %s719 = scalar_lea.sflag [#allocation3], 1
    %720 = vsyncpa %s719, 1
    %721 = vsyncpa [#allocation6], 1
    %722 = vsyncpa [#allocation4], 1
    %s723 = scalar_lea.sflag [#allocation4], 1
    %724 = vsyncpa %s723, 1

</llo_original>
